<compile_context>
chip_gen: v7x
topology: tpu7x:2x2x1
jax: 0.10.0
libtpu: 0.0.40
codegen_flags: <defaults>
</compile_context>

<pallas_src>
import functools

import jax
import jax.numpy as jnp
from jax import lax
from jax.experimental import pallas as pl
from jax.experimental.pallas import tpu as pltpu

GN_GROUPS = 4
GN_EPS = 1e-5
_LANE = 128
_SUB = 8


# --------------------------------------------------------------------------
# helpers
# --------------------------------------------------------------------------
def _round_up(x, m):
    return (x + m - 1) // m * m


def _vmem_limit_bytes():
    """Scoped-VMEM limit tuned per chip generation (96 MiB on 128-MiB parts,
    48 MiB on 64-MiB v7x); conservative if the query is unavailable."""
    cap = None
    try:
        info = pltpu.get_tpu_info()
        cap = getattr(info, "vmem_capacity_bytes", None)
    except Exception:
        cap = None
    if not cap:
        cap = 64 * 1024 * 1024
    return max(32 * 1024 * 1024, min(100 * 1024 * 1024, int(cap) * 3 // 4))


def _padded_bytes(nb, c, h, w):
    """f32 VMEM footprint of an (nb, C, h, w) block with (8,128) tile padding."""
    return 4 * nb * c * _round_up(max(h, 1), _SUB) * _round_up(max(w, 1), _LANE)


def _pick_nb_fused(n, c, h, w, limit, params_bytes):
    """Largest batch-block (divisor of N, capped at N//2 so v7x's 2 TCs both
    get work) whose fused block comfortably fits the VMEM budget."""
    cap = n if n == 1 else max(1, n // 2)
    for nb in range(cap, 0, -1):
        if n % nb != 0:
            continue
        # 2x in + 2x out (double buffer) + ~3 full-block temporaries + params.
        if 7 * _padded_bytes(nb, c, h, w) + params_bytes + (2 << 20) <= limit:
            return nb
    return 0


def _pick_nb_streaming(n, c, w, budget):
    cap = n if n == 1 else max(1, n // 2)
    min_blk = _padded_bytes(1, c, _SUB, w)
    for nb in range(cap, 0, -1):
        if n % nb == 0 and nb * min_blk <= budget:
            return nb
    return 1


def _pick_tile_h(h, nb, c, w, budget, max_tile_h=None):
    """Largest H tile (multiple of 8, or full H) fitting the per-block budget."""
    if h <= _SUB:
        return h
    row_bytes = 4 * nb * c * _round_up(w, _LANE)
    th = max(_SUB, (budget // max(row_bytes, 1)) // _SUB * _SUB)
    cap = _round_up(h, _SUB)
    if max_tile_h is not None:
        cap = min(cap, max(_SUB, (max_tile_h // _SUB) * _SUB))
    th = min(th, cap)
    return h if th >= h else th


# --------------------------------------------------------------------------
# fused single-pass kernel: stats + GroupNorm coefficients + gate in one go
# --------------------------------------------------------------------------
def _fused_kernel(x_ref, p_ref, o_ref):
    nb, C, H, W = x_ref.shape
    G = GN_GROUPS
    Cg = C // G
    hw = float(H * W)

    x = x_ref[...]                                   # (nb, C, H, W) f32
    p = p_ref[...]                                   # (1, C, 1, 4): w1|b1|w2*gamma|w2*beta+b2/C
    w1 = p[:, :, :, 0:1]                             # (1, C, 1, 1)
    b1 = p[:, :, :, 1:2]
    wg = p[:, :, :, 2:3]
    cbv = p[:, :, :, 3:4]

    # Per-channel stats of x, two-pass (numerically stable).
    sx = jnp.sum(jnp.sum(x, axis=3, keepdims=True), axis=2, keepdims=True)   # (nb,C,1,1)
    m_x = sx * (1.0 / hw)
    d = x - m_x
    s2 = jnp.sum(jnp.sum(d * d, axis=3, keepdims=True), axis=2, keepdims=True)

    # Per-channel mean of y = w1*x + b1, then pooled GroupNorm statistics:
    #   var_g = sum_{c in g} (w1^2 * s2_c + HW*(mu_y_c - mean_g)^2) / (Cg*HW)
    mu_y = w1 * m_x + b1                                                      # (nb,C,1,1)
    means = []
    for g in range(G):
        mg = jnp.mean(mu_y[:, g * Cg:(g + 1) * Cg], axis=1, keepdims=True)    # (nb,1,1,1)
        means.append(jnp.broadcast_to(mg, (nb, Cg, 1, 1)))
    mean_c = jnp.concatenate(means, axis=1)                                   # (nb,C,1,1)

    varnum = (w1 * w1) * s2 + hw * (mu_y - mean_c) ** 2
    invs = []
    for g in range(G):
        vg = jnp.sum(varnum[:, g * Cg:(g + 1) * Cg], axis=1, keepdims=True) * (1.0 / (Cg * hw))
        invs.append(jnp.broadcast_to(lax.rsqrt(vg + GN_EPS), (nb, Cg, 1, 1)))
    inv_c = jnp.concatenate(invs, axis=1)                                     # (nb,C,1,1)

    # Fused depthwise-1x1 + GN + 1x1 coefficients.
    a = wg * w1 * inv_c                                                       # (nb,C,1,1)
    const = jnp.sum(wg * inv_c * (b1 - mean_c) + cbv, axis=1, keepdims=True)  # (nb,1,1,1)

    # Gate: channel reduction over an outer dim -> plain VPU adds (no MXU).
    q = jnp.sum(a * x, axis=1, keepdims=True) + const                         # (nb,1,H,W)
    o_ref[...] = x * jax.nn.sigmoid(q)


# --------------------------------------------------------------------------
# streaming two-pass fallback kernels
# --------------------------------------------------------------------------
def _stats_kernel(x_ref, sx_ref, sxx_ref, *, valid_h, need_mask):
    """Accumulate per-channel sum(x), sum(x*x) over H tiles (tail masked)."""
    @pl.when(pl.program_id(1) == 0)
    def _():
        sx_ref[...] = jnp.zeros_like(sx_ref)
        sxx_ref[...] = jnp.zeros_like(sxx_ref)

    x = x_ref[...]                                    # (nb, C, th, W)
    if need_mask:
        th = x_ref.shape[2]
        h0 = pl.program_id(1) * th
        rows = lax.broadcasted_iota(jnp.int32, (1, 1, th, 1), 2) + h0
        x = jnp.where(rows < valid_h, x, 0.0)
    sx_ref[...] += jnp.sum(jnp.sum(x, axis=3, keepdims=True), axis=2, keepdims=True)
    sxx_ref[...] += jnp.sum(jnp.sum(x * x, axis=3, keepdims=True), axis=2, keepdims=True)


def _gate_kernel(x_ref, a_ref, c_ref, o_ref):
    """out = x * sigmoid(sum_c a[c]*x[c] + const); partial tail blocks are
    clipped by Pallas on writeback, so no masking is needed here."""
    x = x_ref[...]                                    # (nb, C, th, W)
    a = a_ref[...]                                    # (nb, C, 1, 1)
    c = c_ref[...]                                    # (nb, 1, 1, 1)
    q = jnp.sum(a * x, axis=1, keepdims=True) + c     # (nb, 1, th, W)
    o_ref[...] = x * jax.nn.sigmoid(q)


# --------------------------------------------------------------------------
# wrapper
# --------------------------------------------------------------------------
@functools.partial(jax.jit, static_argnames=("force_two_pass", "max_tile_h"))
def sse_pallas(U, w1, b1, gamma, beta, w2, b2, *, force_two_pass=False, max_tile_h=None):
    """U: (N, C, H, W). w1,b1,gamma,beta,w2: (C,). b2: scalar."""
    N, C, H, W = U.shape
    assert C % GN_GROUPS == 0, "in_channels must be divisible by GroupNorm groups (4)"
    Cg = C // GN_GROUPS
    HW = H * W

    x = U.astype(jnp.float32)
    vmem_limit = _vmem_limit_bytes()
    params_bytes = C * _SUB * _LANE * 4               # (1, C, 1, 4) block, tile-padded

    nb_fused = 0 if force_two_pass else _pick_nb_fused(N, C, H, W, vmem_limit, params_bytes)

    # ---------------- fused single-pass path (1 read + 1 write of x) ----------------
    if nb_fused:
        wg = (w2 * gamma).astype(jnp.float32)
        cbv = (w2 * beta + b2 / jnp.float32(C)).astype(jnp.float32)
        params = jnp.stack([w1.astype(jnp.float32), b1.astype(jnp.float32), wg, cbv],
                           axis=-1).reshape(1, C, 1, 4)
        out = pl.pallas_call(
            _fused_kernel,
            out_shape=jax.ShapeDtypeStruct((N, C, H, W), jnp.float32),
            grid_spec=pltpu.PrefetchScalarGridSpec(
                num_scalar_prefetch=0,
                grid=(N // nb_fused,),
                in_specs=[pl.BlockSpec((nb_fused, C, H, W), lambda b: (b, 0, 0, 0)),
                          pl.BlockSpec((1, C, 1, 4), lambda b: (0, 0, 0, 0))],
                out_specs=pl.BlockSpec((nb_fused, C, H, W), lambda b: (b, 0, 0, 0))),
            compiler_params=pltpu.CompilerParams(
                dimension_semantics=("parallel",),
                vmem_limit_bytes=vmem_limit),
        )(x, params)
        return out.astype(U.dtype)

    # ---------------- streaming two-pass fallback (large H*W) ----------------
    # TODO(synk): extremely wide C*W blocks (C*roundup(W,128) > ~1.5M f32) would
    # additionally need W tiling; not needed for feature-map-sized inputs.
    nb = _pick_nb_streaming(N, C, W, vmem_limit // 6)
    th_s = _pick_tile_h(H, nb, C, W, vmem_limit // 3, max_tile_h)   # stats: only input buffered
    th_g = _pick_tile_h(H, nb, C, W, vmem_limit // 6, max_tile_h)   # gate: input + output buffered

    # pass 1: per-channel sum(x), sum(x^2)
    sum_x, sum_x2 = pl.pallas_call(
        functools.partial(_stats_kernel, valid_h=H, need_mask=(H % th_s != 0)),
        out_shape=(jax.ShapeDtypeStruct((N, C, 1, 1), jnp.float32),
                   jax.ShapeDtypeStruct((N, C, 1, 1), jnp.float32)),
        grid_spec=pltpu.PrefetchScalarGridSpec(
            num_scalar_prefetch=0,
            grid=(N // nb, pl.cdiv(H, th_s)),
            in_specs=[pl.BlockSpec((nb, C, th_s, W), lambda b, t: (b, 0, t, 0))],
            out_specs=(pl.BlockSpec((nb, C, 1, 1), lambda b, t: (b, 0, 0, 0)),
                       pl.BlockSpec((nb, C, 1, 1), lambda b, t: (b, 0, 0, 0)))),
        compiler_params=pltpu.CompilerParams(
            dimension_semantics=("parallel", "arbitrary"),
            vmem_limit_bytes=vmem_limit),
    )(x)

    # O(N*C) coefficient glue (depthwise 1x1 + GN + 1x1 fused).
    # NOTE: one-pass variance with clamp; the fused path above uses the
    # numerically stable pooled two-pass variance.
    sx = sum_x[:, :, 0, 0]                            # (N, C)
    sxx = sum_x2[:, :, 0, 0]
    hw_f = jnp.float32(HW)
    w1r, b1r = w1[None, :], b1[None, :]
    sum_y = w1r * sx + b1r * hw_f
    sum_y2 = (w1r * w1r) * sxx + 2.0 * (w1r * b1r) * sx + (b1r * b1r) * hw_f
    g_sum = sum_y.reshape(N, GN_GROUPS, Cg).sum(-1)
    g_sum2 = sum_y2.reshape(N, GN_GROUPS, Cg).sum(-1)
    n_el = jnp.float32(Cg * HW)
    mean_g = g_sum / n_el
    var_g = jnp.maximum(g_sum2 / n_el - mean_g * mean_g, 0.0)
    inv_g = lax.rsqrt(var_g + GN_EPS)
    inv_c = jnp.repeat(inv_g, Cg, axis=1)
    mean_c = jnp.repeat(mean_g, Cg, axis=1)
    a = (w2 * gamma * w1)[None, :] * inv_c
    const = jnp.sum(
        w2[None, :] * (gamma[None, :] * inv_c * (b1r - mean_c) + beta[None, :]),
        axis=1) + b2
    a4 = a.reshape(N, C, 1, 1).astype(jnp.float32)
    c4 = const.reshape(N, 1, 1, 1).astype(jnp.float32)

    # pass 2: gate and multiply (fully parallel)
    out = pl.pallas_call(
        _gate_kernel,
        out_shape=jax.ShapeDtypeStruct((N, C, H, W), jnp.float32),
        grid_spec=pltpu.PrefetchScalarGridSpec(
            num_scalar_prefetch=0,
            grid=(N // nb, pl.cdiv(H, th_g)),
            in_specs=[pl.BlockSpec((nb, C, th_g, W), lambda b, t: (b, 0, t, 0)),
                      pl.BlockSpec((nb, C, 1, 1), lambda b, t: (b, 0, 0, 0)),
                      pl.BlockSpec((nb, 1, 1, 1), lambda b, t: (b, 0, 0, 0))],
            out_specs=pl.BlockSpec((nb, C, th_g, W), lambda b, t: (b, 0, t, 0))),
        compiler_params=pltpu.CompilerParams(
            dimension_semantics=("parallel", "parallel"),
            vmem_limit_bytes=vmem_limit),
    )(x, a4, c4)
    return out.astype(U.dtype)


# --------------------------------------------------------------------------
# pure-JAX reference (PyTorch module semantics)
# --------------------------------------------------------------------------
def sse_reference(U, w1, b1, gamma, beta, w2, b2):
    N, C, H, W = U.shape
    y = U * w1[None, :, None, None] + b1[None, :, None, None]
    Cg = C // GN_GROUPS
    yg = y.reshape(N, GN_GROUPS, Cg * H * W)
    mean = yg.mean(-1, keepdims=True)
    var = yg.var(-1, keepdims=True)
    yn = ((yg - mean) / jnp.sqrt(var + GN_EPS)).reshape(N, C, H, W)
    yn = yn * gamma[None, :, None, None] + beta[None, :, None, None]
    q = jnp.sum(yn * w2[None, :, None, None], axis=1, keepdims=True) + b2
    return U * jax.nn.sigmoid(q)


if __name__ == "__main__":
    key = jax.random.PRNGKey(0)
    N, C, H, W = 2, 8, 16, 16   # in_channels divisible by GroupNorm groups (4)

    k = jax.random.split(key, 7)
    U = jax.random.normal(k[0], (N, C, H, W), jnp.float32)
    # deterministic synthetic parameters (shapes from the module __init__)
    w1 = jax.random.normal(k[1], (C,), jnp.float32) * 0.5 + 1.0     # conv1 depthwise (C,1,1,1)
    b1 = jax.random.normal(k[2], (C,), jnp.float32) * 0.1           # conv1 bias
    gamma = jax.random.normal(k[3], (C,), jnp.float32) * 0.2 + 1.0  # GroupNorm weight
    beta = jax.random.normal(k[4], (C,), jnp.float32) * 0.1         # GroupNorm bias
    w2 = jax.random.normal(k[5], (C,), jnp.float32) * 0.3           # conv2 weight (1,C,1,1)
    b2 = jax.random.normal(k[6], (1,), jnp.float32)[0] * 0.1        # conv2 bias (1,)

    # fused single-pass path (default for small feature maps)
    out = sse_pallas(U, w1, b1, gamma, beta, w2, b2)
    jax.block_until_ready(out)
    ref = sse_reference(U, w1, b1, gamma, beta, w2, b2)
    assert out.shape == (N, C, H, W)
    assert jnp.allclose(out, ref, atol=2e-5, rtol=2e-5), (
        float(jnp.max(jnp.abs(out - ref))))

    # streaming two-pass fallback with ragged H tiles (exercises in-kernel masking)
    H2, W2 = 20, 16
    U2 = jax.random.normal(k[0], (N, C, H2, W2), jnp.float32)
    out2 = sse_pallas(U2, w1, b1, gamma, beta, w2, b2,
                      force_two_pass=True, max_tile_h=8)
    jax.block_until_ready(out2)
    ref2 = sse_reference(U2, w1, b1, gamma, beta, w2, b2)
    assert out2.shape == (N, C, H2, W2)
    assert jnp.allclose(out2, ref2, atol=1e-4, rtol=1e-4), (
        float(jnp.max(jnp.abs(out2 - ref2))))

    print("KERNEL_OK")
</pallas_src>

<mosaic_0001>
module attributes {stable_mosaic.version = 11 : i64} {
  func.func @_fused_kernel(%arg0: i32, %arg1: memref<1x8x16x16xf32, #tpu.memory_space<vmem>>, %arg2: memref<1x8x1x4xf32, #tpu.memory_space<vmem>>, %arg3: memref<1x8x16x16xf32, #tpu.memory_space<vmem>>) attributes {dimension_semantics = [#tpu.dimension_semantics<parallel>], iteration_bounds = array<i64: 2>, scalar_prefetch = 0 : i64, scratch_operands = 0 : i64, tpu.core_type = #tpu.core_type<tc>, window_params = [{transform_indices = @transform_0, window_bounds = array<i64: 1, 8, 16, 16>}, {pipeline_mode = #tpu.pipeline_mode<synchronous>, transform_indices = @transform_1, window_bounds = array<i64: 1, 8, 1, 4>}, {transform_indices = @transform_2, window_bounds = array<i64: 1, 8, 16, 16>}]} {
    %c0 = arith.constant 0 : index
    %c0_0 = arith.constant 0 : index
    %c0_1 = arith.constant 0 : index
    %c0_2 = arith.constant 0 : index
    %0 = vector.load %arg1[%c0, %c0_0, %c0_1, %c0_2] : memref<1x8x16x16xf32, #tpu.memory_space<vmem>>, vector<1x8x16x16xf32>
    %c0_3 = arith.constant 0 : index
    %c0_4 = arith.constant 0 : index
    %c0_5 = arith.constant 0 : index
    %c0_6 = arith.constant 0 : index
    %1 = vector.load %arg2[%c0_3, %c0_4, %c0_5, %c0_6] : memref<1x8x1x4xf32, #tpu.memory_space<vmem>>, vector<1x8x1x4xf32>
    %2 = vector.extract_strided_slice %1 {offsets = [0, 0, 0, 0], sizes = [1, 8, 1, 1], strides = [1, 1, 1, 1]} : vector<1x8x1x4xf32> to vector<1x8x1x1xf32>
    %3 = vector.extract_strided_slice %1 {offsets = [0, 0, 0, 1], sizes = [1, 8, 1, 1], strides = [1, 1, 1, 1]} : vector<1x8x1x4xf32> to vector<1x8x1x1xf32>
    %4 = vector.extract_strided_slice %1 {offsets = [0, 0, 0, 2], sizes = [1, 8, 1, 1], strides = [1, 1, 1, 1]} : vector<1x8x1x4xf32> to vector<1x8x1x1xf32>
    %5 = vector.extract_strided_slice %1 {offsets = [0, 0, 0, 3], sizes = [1, 8, 1, 1], strides = [1, 1, 1, 1]} : vector<1x8x1x4xf32> to vector<1x8x1x1xf32>
    %cst = arith.constant dense<0.000000e+00> : vector<1x8x16xf32>
    %6 = vector.multi_reduction <add>, %0, %cst [3] : vector<1x8x16x16xf32> to vector<1x8x16xf32>
    %7 = vector.shape_cast %6 : vector<1x8x16xf32> to vector<1x8x16x1xf32>
    %cst_7 = arith.constant dense<0.000000e+00> : vector<1x8x1xf32>
    %8 = vector.multi_reduction <add>, %7, %cst_7 [2] : vector<1x8x16x1xf32> to vector<1x8x1xf32>
    %9 = vector.shape_cast %8 : vector<1x8x1xf32> to vector<1x8x1x1xf32>
    %cst_8 = arith.constant 3.906250e-03 : f32
    %10 = vector.broadcast %cst_8 : f32 to vector<1x8x1x1xf32>
    %11 = arith.mulf %9, %10 : vector<1x8x1x1xf32>
    %12 = vector.broadcast %11 : vector<1x8x1x1xf32> to vector<1x8x16x16xf32>
    %13 = arith.subf %0, %12 : vector<1x8x16x16xf32>
    %14 = arith.mulf %13, %13 : vector<1x8x16x16xf32>
    %cst_9 = arith.constant dense<0.000000e+00> : vector<1x8x16xf32>
    %15 = vector.multi_reduction <add>, %14, %cst_9 [3] : vector<1x8x16x16xf32> to vector<1x8x16xf32>
    %16 = vector.shape_cast %15 : vector<1x8x16xf32> to vector<1x8x16x1xf32>
    %cst_10 = arith.constant dense<0.000000e+00> : vector<1x8x1xf32>
    %17 = vector.multi_reduction <add>, %16, %cst_10 [2] : vector<1x8x16x1xf32> to vector<1x8x1xf32>
    %18 = vector.shape_cast %17 : vector<1x8x1xf32> to vector<1x8x1x1xf32>
    %19 = arith.mulf %2, %11 : vector<1x8x1x1xf32>
    %20 = arith.addf %19, %3 : vector<1x8x1x1xf32>
    %21 = vector.extract_strided_slice %20 {offsets = [0, 0, 0, 0], sizes = [1, 2, 1, 1], strides = [1, 1, 1, 1]} : vector<1x8x1x1xf32> to vector<1x2x1x1xf32>
    %cst_11 = arith.constant dense<0.000000e+00> : vector<1x1x1xf32>
    %22 = vector.multi_reduction <add>, %21, %cst_11 [1] : vector<1x2x1x1xf32> to vector<1x1x1xf32>
    %23 = vector.shape_cast %22 : vector<1x1x1xf32> to vector<1x1x1x1xf32>
    %cst_12 = arith.constant 2.000000e+00 : f32
    %24 = vector.broadcast %cst_12 : f32 to vector<1x1x1x1xf32>
    %25 = arith.divf %23, %24 : vector<1x1x1x1xf32>
    %26 = vector.shape_cast %25 : vector<1x1x1x1xf32> to vector<1x1x1x1xf32>
    %27 = vector.broadcast %26 : vector<1x1x1x1xf32> to vector<1x2x1x1xf32>
    %28 = vector.extract_strided_slice %20 {offsets = [0, 2, 0, 0], sizes = [1, 2, 1, 1], strides = [1, 1, 1, 1]} : vector<1x8x1x1xf32> to vector<1x2x1x1xf32>
    %cst_13 = arith.constant dense<0.000000e+00> : vector<1x1x1xf32>
    %29 = vector.multi_reduction <add>, %28, %cst_13 [1] : vector<1x2x1x1xf32> to vector<1x1x1xf32>
    %30 = vector.shape_cast %29 : vector<1x1x1xf32> to vector<1x1x1x1xf32>
    %cst_14 = arith.constant 2.000000e+00 : f32
    %31 = vector.broadcast %cst_14 : f32 to vector<1x1x1x1xf32>
    %32 = arith.divf %30, %31 : vector<1x1x1x1xf32>
    %33 = vector.shape_cast %32 : vector<1x1x1x1xf32> to vector<1x1x1x1xf32>
    %34 = vector.broadcast %33 : vector<1x1x1x1xf32> to vector<1x2x1x1xf32>
    %35 = vector.extract_strided_slice %20 {offsets = [0, 4, 0, 0], sizes = [1, 2, 1, 1], strides = [1, 1, 1, 1]} : vector<1x8x1x1xf32> to vector<1x2x1x1xf32>
    %cst_15 = arith.constant dense<0.000000e+00> : vector<1x1x1xf32>
    %36 = vector.multi_reduction <add>, %35, %cst_15 [1] : vector<1x2x1x1xf32> to vector<1x1x1xf32>
    %37 = vector.shape_cast %36 : vector<1x1x1xf32> to vector<1x1x1x1xf32>
    %cst_16 = arith.constant 2.000000e+00 : f32
    %38 = vector.broadcast %cst_16 : f32 to vector<1x1x1x1xf32>
    %39 = arith.divf %37, %38 : vector<1x1x1x1xf32>
    %40 = vector.shape_cast %39 : vector<1x1x1x1xf32> to vector<1x1x1x1xf32>
    %41 = vector.broadcast %40 : vector<1x1x1x1xf32> to vector<1x2x1x1xf32>
    %42 = vector.extract_strided_slice %20 {offsets = [0, 6, 0, 0], sizes = [1, 2, 1, 1], strides = [1, 1, 1, 1]} : vector<1x8x1x1xf32> to vector<1x2x1x1xf32>
    %cst_17 = arith.constant dense<0.000000e+00> : vector<1x1x1xf32>
    %43 = vector.multi_reduction <add>, %42, %cst_17 [1] : vector<1x2x1x1xf32> to vector<1x1x1xf32>
    %44 = vector.shape_cast %43 : vector<1x1x1xf32> to vector<1x1x1x1xf32>
    %cst_18 = arith.constant 2.000000e+00 : f32
    %45 = vector.broadcast %cst_18 : f32 to vector<1x1x1x1xf32>
    %46 = arith.divf %44, %45 : vector<1x1x1x1xf32>
    %47 = vector.shape_cast %46 : vector<1x1x1x1xf32> to vector<1x1x1x1xf32>
    %48 = vector.broadcast %47 : vector<1x1x1x1xf32> to vector<1x2x1x1xf32>
    %49 = tpu.concatenate %27, %34, %41, %48 in 1 : vector<1x2x1x1xf32>, vector<1x2x1x1xf32>, vector<1x2x1x1xf32>, vector<1x2x1x1xf32> -> vector<1x8x1x1xf32>
    %50 = arith.mulf %2, %2 : vector<1x8x1x1xf32>
    %51 = arith.mulf %50, %18 : vector<1x8x1x1xf32>
    %52 = arith.subf %20, %49 : vector<1x8x1x1xf32>
    %53 = arith.mulf %52, %52 : vector<1x8x1x1xf32>
    %cst_19 = arith.constant 2.560000e+02 : f32
    %54 = vector.broadcast %cst_19 : f32 to vector<1x8x1x1xf32>
    %55 = arith.mulf %54, %53 : vector<1x8x1x1xf32>
    %56 = arith.addf %51, %55 : vector<1x8x1x1xf32>
    %57 = vector.extract_strided_slice %56 {offsets = [0, 0, 0, 0], sizes = [1, 2, 1, 1], strides = [1, 1, 1, 1]} : vector<1x8x1x1xf32> to vector<1x2x1x1xf32>
    %cst_20 = arith.constant dense<0.000000e+00> : vector<1x1x1xf32>
    %58 = vector.multi_reduction <add>, %57, %cst_20 [1] : vector<1x2x1x1xf32> to vector<1x1x1xf32>
    %59 = vector.shape_cast %58 : vector<1x1x1xf32> to vector<1x1x1x1xf32>
    %cst_21 = arith.constant 0.001953125 : f32
    %60 = vector.broadcast %cst_21 : f32 to vector<1x1x1x1xf32>
    %61 = arith.mulf %59, %60 : vector<1x1x1x1xf32>
    %cst_22 = arith.constant 9.99999974E-6 : f32
    %62 = vector.broadcast %cst_22 : f32 to vector<1x1x1x1xf32>
    %63 = arith.addf %61, %62 : vector<1x1x1x1xf32>
    %64 = math.rsqrt %63 : vector<1x1x1x1xf32>
    %65 = vector.shape_cast %64 : vector<1x1x1x1xf32> to vector<1x1x1x1xf32>
    %66 = vector.broadcast %65 : vector<1x1x1x1xf32> to vector<1x2x1x1xf32>
    %67 = vector.extract_strided_slice %56 {offsets = [0, 2, 0, 0], sizes = [1, 2, 1, 1], strides = [1, 1, 1, 1]} : vector<1x8x1x1xf32> to vector<1x2x1x1xf32>
    %cst_23 = arith.constant dense<0.000000e+00> : vector<1x1x1xf32>
    %68 = vector.multi_reduction <add>, %67, %cst_23 [1] : vector<1x2x1x1xf32> to vector<1x1x1xf32>
    %69 = vector.shape_cast %68 : vector<1x1x1xf32> to vector<1x1x1x1xf32>
    %cst_24 = arith.constant 0.001953125 : f32
    %70 = vector.broadcast %cst_24 : f32 to vector<1x1x1x1xf32>
    %71 = arith.mulf %69, %70 : vector<1x1x1x1xf32>
    %cst_25 = arith.constant 9.99999974E-6 : f32
    %72 = vector.broadcast %cst_25 : f32 to vector<1x1x1x1xf32>
    %73 = arith.addf %71, %72 : vector<1x1x1x1xf32>
    %74 = math.rsqrt %73 : vector<1x1x1x1xf32>
    %75 = vector.shape_cast %74 : vector<1x1x1x1xf32> to vector<1x1x1x1xf32>
    %76 = vector.broadcast %75 : vector<1x1x1x1xf32> to vector<1x2x1x1xf32>
    %77 = vector.extract_strided_slice %56 {offsets = [0, 4, 0, 0], sizes = [1, 2, 1, 1], strides = [1, 1, 1, 1]} : vector<1x8x1x1xf32> to vector<1x2x1x1xf32>
    %cst_26 = arith.constant dense<0.000000e+00> : vector<1x1x1xf32>
    %78 = vector.multi_reduction <add>, %77, %cst_26 [1] : vector<1x2x1x1xf32> to vector<1x1x1xf32>
    %79 = vector.shape_cast %78 : vector<1x1x1xf32> to vector<1x1x1x1xf32>
    %cst_27 = arith.constant 0.001953125 : f32
    %80 = vector.broadcast %cst_27 : f32 to vector<1x1x1x1xf32>
    %81 = arith.mulf %79, %80 : vector<1x1x1x1xf32>
    %cst_28 = arith.constant 9.99999974E-6 : f32
    %82 = vector.broadcast %cst_28 : f32 to vector<1x1x1x1xf32>
    %83 = arith.addf %81, %82 : vector<1x1x1x1xf32>
    %84 = math.rsqrt %83 : vector<1x1x1x1xf32>
    %85 = vector.shape_cast %84 : vector<1x1x1x1xf32> to vector<1x1x1x1xf32>
    %86 = vector.broadcast %85 : vector<1x1x1x1xf32> to vector<1x2x1x1xf32>
    %87 = vector.extract_strided_slice %56 {offsets = [0, 6, 0, 0], sizes = [1, 2, 1, 1], strides = [1, 1, 1, 1]} : vector<1x8x1x1xf32> to vector<1x2x1x1xf32>
    %cst_29 = arith.constant dense<0.000000e+00> : vector<1x1x1xf32>
    %88 = vector.multi_reduction <add>, %87, %cst_29 [1] : vector<1x2x1x1xf32> to vector<1x1x1xf32>
    %89 = vector.shape_cast %88 : vector<1x1x1xf32> to vector<1x1x1x1xf32>
    %cst_30 = arith.constant 0.001953125 : f32
    %90 = vector.broadcast %cst_30 : f32 to vector<1x1x1x1xf32>
    %91 = arith.mulf %89, %90 : vector<1x1x1x1xf32>
    %cst_31 = arith.constant 9.99999974E-6 : f32
    %92 = vector.broadcast %cst_31 : f32 to vector<1x1x1x1xf32>
    %93 = arith.addf %91, %92 : vector<1x1x1x1xf32>
    %94 = math.rsqrt %93 : vector<1x1x1x1xf32>
    %95 = vector.shape_cast %94 : vector<1x1x1x1xf32> to vector<1x1x1x1xf32>
    %96 = vector.broadcast %95 : vector<1x1x1x1xf32> to vector<1x2x1x1xf32>
    %97 = tpu.concatenate %66, %76, %86, %96 in 1 : vector<1x2x1x1xf32>, vector<1x2x1x1xf32>, vector<1x2x1x1xf32>, vector<1x2x1x1xf32> -> vector<1x8x1x1xf32>
    %98 = arith.mulf %4, %2 : vector<1x8x1x1xf32>
    %99 = arith.mulf %98, %97 : vector<1x8x1x1xf32>
    %100 = arith.mulf %4, %97 : vector<1x8x1x1xf32>
    %101 = arith.subf %3, %49 : vector<1x8x1x1xf32>
    %102 = arith.mulf %100, %101 : vector<1x8x1x1xf32>
    %103 = arith.addf %102, %5 : vector<1x8x1x1xf32>
    %cst_32 = arith.constant dense<0.000000e+00> : vector<1x1x1xf32>
    %104 = vector.multi_reduction <add>, %103, %cst_32 [1] : vector<1x8x1x1xf32> to vector<1x1x1xf32>
    %105 = vector.shape_cast %104 : vector<1x1x1xf32> to vector<1x1x1x1xf32>
    %106 = vector.broadcast %99 : vector<1x8x1x1xf32> to vector<1x8x16x16xf32>
    %107 = arith.mulf %106, %0 : vector<1x8x16x16xf32>
    %cst_33 = arith.constant dense<0.000000e+00> : vector<1x16x16xf32>
    %108 = vector.multi_reduction <add>, %107, %cst_33 [1] : vector<1x8x16x16xf32> to vector<1x16x16xf32>
    %109 = vector.shape_cast %108 : vector<1x16x16xf32> to vector<1x1x16x16xf32>
    %110 = vector.broadcast %105 : vector<1x1x1x1xf32> to vector<1x1x16x16xf32>
    %111 = arith.addf %109, %110 : vector<1x1x16x16xf32>
    %112 = arith.negf %111 : vector<1x1x16x16xf32>
    %113 = math.exp %112 : vector<1x1x16x16xf32>
    %cst_34 = arith.constant 1.000000e+00 : f32
    %114 = vector.broadcast %cst_34 : f32 to vector<1x1x16x16xf32>
    %115 = arith.addf %114, %113 : vector<1x1x16x16xf32>
    %116 = arith.divf %114, %115 : vector<1x1x16x16xf32>
    %117 = vector.broadcast %116 : vector<1x1x16x16xf32> to vector<1x8x16x16xf32>
    %118 = arith.mulf %0, %117 : vector<1x8x16x16xf32>
    %c0_35 = arith.constant 0 : index
    %c0_36 = arith.constant 0 : index
    %c0_37 = arith.constant 0 : index
    %c0_38 = arith.constant 0 : index
    %119 = vector.load %arg3[%c0_35, %c0_36, %c0_37, %c0_38] : memref<1x8x16x16xf32, #tpu.memory_space<vmem>>, vector<1x8x16x16xf32>
    tpu.vector_store %arg3[%c0_35, %c0_36, %c0_37, %c0_38], %118 {strides = array<i32>} : memref<1x8x16x16xf32, #tpu.memory_space<vmem>>, vector<1x8x16x16xf32>,
    return
  }
  func.func @transform_0(%arg0: i32) -> (i32, i32, i32, i32) {
    %c0_i32 = arith.constant 0 : i32
    %c0_i32_0 = arith.constant 0 : i32
    %c0_i32_1 = arith.constant 0 : i32
    %c0_i32_2 = arith.constant 0 : i32
    return %arg0, %c0_i32, %c0_i32_0, %c0_i32_1 : i32, i32, i32, i32
  }
  func.func @transform_1(%arg0: i32) -> (i32, i32, i32, i32) {
    %c0_i32 = arith.constant 0 : i32
    %c0_i32_0 = arith.constant 0 : i32
    %c0_i32_1 = arith.constant 0 : i32
    %c0_i32_2 = arith.constant 0 : i32
    %c0_i32_3 = arith.constant 0 : i32
    return %c0_i32, %c0_i32_0, %c0_i32_1, %c0_i32_2 : i32, i32, i32, i32
  }
  func.func @transform_2(%arg0: i32) -> (i32, i32, i32, i32) {
    %c0_i32 = arith.constant 0 : i32
    %c0_i32_0 = arith.constant 0 : i32
    %c0_i32_1 = arith.constant 0 : i32
    %c0_i32_2 = arith.constant 0 : i32
    return %arg0, %c0_i32, %c0_i32_0, %c0_i32_1 : i32, i32, i32, i32
  }
}

</mosaic_0001>

<llo_original>
// kernel: sse_pallas.1
$region0: #{sse_pallas.1}
  #allocation0 [shape = 'u32[]', space=smem, size = 0x4, offset = 0x4, fixed_abs, tag = 'smem constant byte address 0x4 - core index']
  #allocation1 [shape = 'u32[144,128]{1,0:T(1,128)}', space=vmem, size = 0x12000, scoped, tag = 'internal scratch']
  %s0 = inlined_call_operand.hbm [shape: f32[2,8,16,16], index: 0, kind: input, shape index: {}]
  %s1 = inlined_call_operand.vmem [shape: f32[1,8,1,4], index: 1, kind: input, shape index: {}]
  %s2 = inlined_call_operand.hbm [shape: f32[2,8,16,16], index: 2, kind: output, shape index: {}]
  %s3 = sld [smem:[#allocation0]]
  $region45: #{sse_pallas.1} parent=0
    _
  %s5 = ssub.s32 1, %s3
  %s6 = scalar_select 0, %s5, %s3
  $region1: #{sse_pallas.1} parent=0
    #allocation2 [shape = 'u8[131072]{0}', space=vmem, size = 0x20000, scoped, tag = 'input window, operand 0']
    #allocation3 [shape = 's32[2]{0}', space=sflag, size = 0x8, scoped, tag = 'scoped memory for sse_pallas.1']
    #allocation4 [shape = 's32[2]{0}', space=sflag, size = 0x8, scoped, tag = 'scoped memory for sse_pallas.1']
    #allocation5 [shape = 'u8[131072]{0}', space=vmem, size = 0x20000, scoped, tag = 'output window, operand 0']
    %7 = vsyncpa [#allocation3], 0
    %s8 = scalar_lea.sflag [#allocation3], 1
    %9 = vsyncpa %s8, 0
    %10 = vsyncpa [#allocation4], 0
    %s11 = scalar_lea.sflag [#allocation4], 1
    %12 = vsyncpa %s11, 0
    loop: start=0, step=1, limit=4
    $region2: #{sse_pallas.1} parent=1 // loop_pre_header
      _
    $region3: #{sse_pallas.1} parent=1 // loop_header
      %s14 = sphi 0, %s18
      %p15 = scmp.ge.s32.totalorder %s14, 4
      %s24 = sphi 0, %s26
      %s27 = sphi 0, %s24
      %s28 = sphi 0, %s27
      %s44 = sphi 0, %s28
      %s48 = sphi 0, %s48
      %s50 = sphi 0, %s48
      %s51 = sphi 0, %s50
      %s65 = sphi 0, %s51
      %s71 = sphi 0, %s73
      %s74 = sphi 0, %s71
      %s75 = sphi 0, %s74
      %s91 = sphi 0, %s75
    $region4: #{sse_pallas.1} parent=1 // loop_header_branch
      %17 = sbr.rel (%p15) target = $region8
    $region5: #{sse_pallas.1} parent=1 // loop_body
      %s19 = ssub.s32 %s14, 1
      %s20 = ssub.s32 %s14, 2
      %s21 = sadd.s32 %s14, 1
      %s22 = ssub.s32 %s14, %s21
      %p23 = scmp.eq.s32.totalorder %s22, 0
      %s25 = sadd.s32 %s24, 1
      %s26 = scalar_select %p23, %s24, %s25
      %p29 = pneg %p23
      %p30 = scmp.eq.s32.totalorder %s14, 1
      %p31 = por %p29, %p30
      %p32 = scmp.ne.s32.totalorder %s24, %s27
      %p33 = scmp.eq.s32.totalorder %s14, 0
      %p34 = por %p32, %p33
      %p35 = scmp.ne.s32.totalorder %s24, %s27
      %p36 = scmp.eq.s32.totalorder %s19, 1
      %p37 = por %p35, %p36
      %p38 = scmp.ne.s32.totalorder %s27, %s28
      %p39 = scmp.eq.s32.totalorder %s19, 0
      %p40 = por %p38, %p39
      %p41 = scmp.ne.s32.totalorder %s27, %s28
      %p42 = scmp.eq.s32.totalorder %s20, 1
      %p43 = por %p41, %p42
      %p45 = scmp.ne.s32.totalorder %s28, %s44
      %p46 = scmp.eq.s32.totalorder %s20, 0
      %p47 = por %p45, %p46
      %s49 = sadd.s32 %s48, 1
      %p52 = scmp.eq.s32.totalorder %s14, 1
      %p53 = scmp.ne.s32.totalorder %s48, %s50
      %p54 = scmp.eq.s32.totalorder %s14, 0
      %p55 = por %p53, %p54
      %p56 = scmp.ne.s32.totalorder %s48, %s50
      %p57 = scmp.eq.s32.totalorder %s19, 1
      %p58 = por %p56, %p57
      %p59 = scmp.ne.s32.totalorder %s50, %s51
      %p60 = scmp.eq.s32.totalorder %s19, 0
      %p61 = por %p59, %p60
      %p62 = scmp.ne.s32.totalorder %s50, %s51
      %p63 = scmp.eq.s32.totalorder %s20, 1
      %p64 = por %p62, %p63
      %p66 = scmp.ne.s32.totalorder %s51, %s65
      %p67 = scmp.eq.s32.totalorder %s20, 0
      %p68 = por %p66, %p67
      %s69 = ssub.s32 %s14, %s21
      %p70 = scmp.eq.s32.totalorder %s69, 0
      %s72 = sadd.s32 %s71, 1
      %s73 = scalar_select %p70, %s71, %s72
      %p76 = pneg %p70
      %p77 = scmp.eq.s32.totalorder %s14, 1
      %p78 = por %p76, %p77
      %p79 = scmp.ne.s32.totalorder %s71, %s74
      %p80 = scmp.eq.s32.totalorder %s14, 0
      %p81 = por %p79, %p80
      %p82 = scmp.ne.s32.totalorder %s71, %s74
      %p83 = scmp.eq.s32.totalorder %s19, 1
      %p84 = por %p82, %p83
      %p85 = scmp.ne.s32.totalorder %s74, %s75
      %p86 = scmp.eq.s32.totalorder %s19, 0
      %p87 = por %p85, %p86
      %p88 = scmp.ne.s32.totalorder %s74, %s75
      %p89 = scmp.eq.s32.totalorder %s20, 1
      %p90 = por %p88, %p89
      %p92 = scmp.ne.s32.totalorder %s75, %s91
      %p93 = scmp.eq.s32.totalorder %s20, 0
      %p94 = por %p92, %p93
      %p95 = scmp.le.s32.totalorder 1, %s14
      %p96 = scmp.lt.s32.totalorder %s14, 3
      %p97 = pnand %p95, %p96
      %p98 = pneg %p97
      // Predicated region
      $region9: #{sse_pallas.1} parent=5 // pred_check
        _
      $region10: #{sse_pallas.1} parent=5 // pred_check_branch
        %100 = sbr.rel (%p97) target = $region12
      $region11: #{sse_pallas.1} parent=5 // pred_region
        %s101 = ssub.s32 %s14, 1
        // Predicated region
        $region13: #{sse_pallas.1} parent=11 // pred_check
          %p102 = pneg %p61
        $region14: #{sse_pallas.1} parent=11 // pred_check_branch
          %104 = sbr.rel (%p102) target = $region16
        $region15: #{sse_pallas.1} parent=11 // pred_region
          _
        $region16: #{sse_pallas.1} parent=11 // pred_fallthru
          _
      $region12: #{sse_pallas.1} parent=5 // pred_fallthru
        _
      %p105 = scmp.lt.s32.totalorder %s14, 2
      // Predicated region
      $region17: #{sse_pallas.1} parent=5 // pred_check
        %p106 = pneg %p105
      $region18: #{sse_pallas.1} parent=5 // pred_check_branch
        %108 = sbr.rel (%p106) target = $region20
      $region19: #{sse_pallas.1} parent=5 // pred_region
        // Predicated region
        $region21: #{sse_pallas.1} parent=19 // pred_check
          %p109 = pneg %p34
        $region22: #{sse_pallas.1} parent=19 // pred_check_branch
          %111 = sbr.rel (%p109) target = $region24
        $region23: #{sse_pallas.1} parent=19 // pred_region
          %s112 = sand.u32 %s24, 1
          %s113 = scalar_lea.sflag [#allocation3], %s112
          %s114 = sand.u32 %s24, 1
          %s115 = smul.addr %s114, 128
          %s116 = scalar_lea.vmem [#allocation2], %s115
          %s118 = ssub.s32 2048, 2048
          %119 = vsyncadd %s113, %s118
          %s120 = smul.addr %s14, 16
          %s121 = smul.addr %s120, 128
          %s122 = scalar_lea.hbm %s0, %s121
          %s123 = sshll.u32 %s116, 4
          %s124 = int_to_ptr.vmem [resolvable:$true] %s123
          %129 = dma.hbm_to_vmem [thread:$0]  %s122, 2048, %s124, %s113, 128, 128, 8
        $region24: #{sse_pallas.1} parent=19 // pred_fallthru
          _
      $region20: #{sse_pallas.1} parent=5 // pred_fallthru
        _
      %p130 = scmp.le.s32.totalorder 1, %s14
      %p131 = scmp.lt.s32.totalorder %s14, 3
      %p132 = pnand %p130, %p131
      %p133 = pneg %p132
      // Predicated region
      $region25: #{sse_pallas.1} parent=5 // pred_check
        _
      $region26: #{sse_pallas.1} parent=5 // pred_check_branch
        %135 = sbr.rel (%p132) target = $region28
      $region27: #{sse_pallas.1} parent=5 // pred_region
        %s136 = ssub.s32 %s14, 1
        %s137 = sand.u32 %s27, 1
        %s138 = scalar_lea.sflag [#allocation3], %s137
        %s139 = sand.u32 %s27, 1
        %s140 = smul.addr %s139, 128
        %s141 = scalar_lea.vmem [#allocation2], %s140
        // Predicated region
        $region29: #{sse_pallas.1} parent=27 // pred_check
          %p142 = pneg %p40
        $region30: #{sse_pallas.1} parent=27 // pred_check_branch
          %144 = sbr.rel (%p142) target = $region32
        $region31: #{sse_pallas.1} parent=27 // pred_region
          %145 = dma.done %s138, 2048
        $region32: #{sse_pallas.1} parent=27 // pred_fallthru
          _
        %s146 = sand.u32 %s27, 1
        %s147 = scalar_lea.sflag [#allocation3], %s146
        %s148 = sand.u32 %s27, 1
        %s149 = smul.addr %s148, 128
        %s150 = scalar_lea.vmem [#allocation2], %s149
        %p151 = pneg %p40
        %p152 = pneg %p37
        %p153 = pneg %p61
        %p154 = pneg %p58
        %p155 = pneg %p87
        %p156 = pneg %p84
        %s157 = sand.u32 %s74, 1
        %s158 = scalar_lea.sflag [#allocation4], %s157
        %s159 = sand.u32 %s74, 1
        %s160 = smul.addr %s159, 128
        %s161 = scalar_lea.vmem [#allocation5], %s160
        %v162 = vld [vmem:[%s141] sm:$0xff]
        %v163 = vld [vmem:[%s141 + $0x8] sm:$0xff]
        %v164 = vld [vmem:[%s141 + $0x10] sm:$0xff]
        %v165 = vld [vmem:[%s141 + $0x18] sm:$0xff]
        %v166 = vld [vmem:[%s141 + $0x20] sm:$0xff]
        %v167 = vld [vmem:[%s141 + $0x28] sm:$0xff]
        %v168 = vld [vmem:[%s141 + $0x30] sm:$0xff]
        %v169 = vld [vmem:[%s141 + $0x38] sm:$0xff]
        %v170 = vld [vmem:[%s141 + $0x40] sm:$0xff]
        %v171 = vld [vmem:[%s141 + $0x48] sm:$0xff]
        %v172 = vld [vmem:[%s141 + $0x50] sm:$0xff]
        %v173 = vld [vmem:[%s141 + $0x58] sm:$0xff]
        %v174 = vld [vmem:[%s141 + $0x60] sm:$0xff]
        %v175 = vld [vmem:[%s141 + $0x68] sm:$0xff]
        %v176 = vld [vmem:[%s141 + $0x70] sm:$0xff]
        %v177 = vld [vmem:[%s141 + $0x78] sm:$0xff]
        %v178 = vld [vmem:[%s1] sm:$0x1]
        %v179 = vld [vmem:[%s1 + $0x1] sm:$0x1]
        %v180 = vld [vmem:[%s1 + $0x2] sm:$0x1]
        %v181 = vld [vmem:[%s1 + $0x3] sm:$0x1]
        %v182 = vld [vmem:[%s1 + $0x4] sm:$0x1]
        %v183 = vld [vmem:[%s1 + $0x5] sm:$0x1]
        %v184 = vld [vmem:[%s1 + $0x6] sm:$0x1]
        %v185 = vld [vmem:[%s1 + $0x7] sm:$0x1]
        %vm186 = vcmask 130048
        %v187 = vsel %vm186, %v162, 0.0
        %188 = vadd.xlane.f32.xlu0 %v187
        %v189 = vpop.xlane.xlu0 %188
        %v190 = vsel %vm186, %v163, 0.0
        %191 = vadd.xlane.f32.xlu0 %v190
        %v192 = vpop.xlane.xlu0 %191
        %v193 = vsel %vm186, %v164, 0.0
        %194 = vadd.xlane.f32.xlu0 %v193
        %v195 = vpop.xlane.xlu0 %194
        %v196 = vsel %vm186, %v165, 0.0
        %197 = vadd.xlane.f32.xlu0 %v196
        %v198 = vpop.xlane.xlu0 %197
        %v199 = vsel %vm186, %v166, 0.0
        %200 = vadd.xlane.f32.xlu0 %v199
        %v201 = vpop.xlane.xlu0 %200
        %v202 = vsel %vm186, %v167, 0.0
        %203 = vadd.xlane.f32.xlu0 %v202
        %v204 = vpop.xlane.xlu0 %203
        %v205 = vsel %vm186, %v168, 0.0
        %206 = vadd.xlane.f32.xlu0 %v205
        %v207 = vpop.xlane.xlu0 %206
        %v208 = vsel %vm186, %v169, 0.0
        %209 = vadd.xlane.f32.xlu0 %v208
        %v210 = vpop.xlane.xlu0 %209
        %v211 = vsel %vm186, %v170, 0.0
        %212 = vadd.xlane.f32.xlu0 %v211
        %v213 = vpop.xlane.xlu0 %212
        %v214 = vsel %vm186, %v171, 0.0
        %215 = vadd.xlane.f32.xlu0 %v214
        %v216 = vpop.xlane.xlu0 %215
        %v217 = vsel %vm186, %v172, 0.0
        %218 = vadd.xlane.f32.xlu0 %v217
        %v219 = vpop.xlane.xlu0 %218
        %v220 = vsel %vm186, %v173, 0.0
        %221 = vadd.xlane.f32.xlu0 %v220
        %v222 = vpop.xlane.xlu0 %221
        %v223 = vsel %vm186, %v174, 0.0
        %224 = vadd.xlane.f32.xlu0 %v223
        %v225 = vpop.xlane.xlu0 %224
        %v226 = vsel %vm186, %v175, 0.0
        %227 = vadd.xlane.f32.xlu0 %v226
        %v228 = vpop.xlane.xlu0 %227
        %v229 = vsel %vm186, %v176, 0.0
        %230 = vadd.xlane.f32.xlu0 %v229
        %v231 = vpop.xlane.xlu0 %230
        %v232 = vsel %vm186, %v177, 0.0
        %233 = vadd.xlane.f32.xlu0 %v232
        %v234 = vpop.xlane.xlu0 %233
        %v235 = vadd.f32 %v189, %v192
        %v236 = vrot.slane %v235, 4
        %v237 = vadd.f32 %v235, %v236
        %v238 = vrot.slane %v237, 2
        %v239 = vadd.f32 %v237, %v238
        %v240 = vrot.slane %v239, 1
        %v241 = vadd.f32 %v239, %v240
        %v242 = vadd.f32 %v195, %v198
        %v243 = vrot.slane %v242, 4
        %v244 = vadd.f32 %v242, %v243
        %v245 = vrot.slane %v244, 2
        %v246 = vadd.f32 %v244, %v245
        %v247 = vrot.slane %v246, 1
        %v248 = vadd.f32 %v246, %v247
        %v249 = vadd.f32 %v201, %v204
        %v250 = vrot.slane %v249, 4
        %v251 = vadd.f32 %v249, %v250
        %v252 = vrot.slane %v251, 2
        %v253 = vadd.f32 %v251, %v252
        %v254 = vrot.slane %v253, 1
        %v255 = vadd.f32 %v253, %v254
        %v256 = vadd.f32 %v207, %v210
        %v257 = vrot.slane %v256, 4
        %v258 = vadd.f32 %v256, %v257
        %v259 = vrot.slane %v258, 2
        %v260 = vadd.f32 %v258, %v259
        %v261 = vrot.slane %v260, 1
        %v262 = vadd.f32 %v260, %v261
        %v263 = vadd.f32 %v213, %v216
        %v264 = vrot.slane %v263, 4
        %v265 = vadd.f32 %v263, %v264
        %v266 = vrot.slane %v265, 2
        %v267 = vadd.f32 %v265, %v266
        %v268 = vrot.slane %v267, 1
        %v269 = vadd.f32 %v267, %v268
        %v270 = vadd.f32 %v219, %v222
        %v271 = vrot.slane %v270, 4
        %v272 = vadd.f32 %v270, %v271
        %v273 = vrot.slane %v272, 2
        %v274 = vadd.f32 %v272, %v273
        %v275 = vrot.slane %v274, 1
        %v276 = vadd.f32 %v274, %v275
        %v277 = vadd.f32 %v225, %v228
        %v278 = vrot.slane %v277, 4
        %v279 = vadd.f32 %v277, %v278
        %v280 = vrot.slane %v279, 2
        %v281 = vadd.f32 %v279, %v280
        %v282 = vrot.slane %v281, 1
        %v283 = vadd.f32 %v281, %v282
        %v284 = vadd.f32 %v231, %v234
        %v285 = vrot.slane %v284, 4
        %v286 = vadd.f32 %v284, %v285
        %v287 = vrot.slane %v286, 2
        %v288 = vadd.f32 %v286, %v287
        %v289 = vrot.slane %v288, 1
        %v290 = vadd.f32 %v288, %v289
        %v291 = vmul.f32 %v241, 0.00390625
        %v292 = vmul.f32 %v248, 0.00390625
        %v293 = vmul.f32 %v255, 0.00390625
        %v294 = vmul.f32 %v262, 0.00390625
        %v295 = vmul.f32 %v269, 0.00390625
        %v296 = vmul.f32 %v276, 0.00390625
        %v297 = vmul.f32 %v283, 0.00390625
        %v298 = vmul.f32 %v290, 0.00390625
        %v299 = vsub.f32 %v162, %v291
        %v300 = vsub.f32 %v163, %v291
        %v301 = vsub.f32 %v164, %v292
        %v302 = vsub.f32 %v165, %v292
        %v303 = vsub.f32 %v166, %v293
        %v304 = vsub.f32 %v167, %v293
        %v305 = vsub.f32 %v168, %v294
        %v306 = vsub.f32 %v169, %v294
        %v307 = vsub.f32 %v170, %v295
        %v308 = vsub.f32 %v171, %v295
        %v309 = vsub.f32 %v172, %v296
        %v310 = vsub.f32 %v173, %v296
        %v311 = vsub.f32 %v174, %v297
        %v312 = vsub.f32 %v175, %v297
        %v313 = vsub.f32 %v176, %v298
        %v314 = vsub.f32 %v177, %v298
        %v315 = vmul.f32 %v299, %v299
        %v316 = vmul.f32 %v300, %v300
        %v317 = vmul.f32 %v301, %v301
        %v318 = vmul.f32 %v302, %v302
        %v319 = vmul.f32 %v303, %v303
        %v320 = vmul.f32 %v304, %v304
        %v321 = vmul.f32 %v305, %v305
        %v322 = vmul.f32 %v306, %v306
        %v323 = vmul.f32 %v307, %v307
        %v324 = vmul.f32 %v308, %v308
        %v325 = vmul.f32 %v309, %v309
        %v326 = vmul.f32 %v310, %v310
        %v327 = vmul.f32 %v311, %v311
        %v328 = vmul.f32 %v312, %v312
        %v329 = vmul.f32 %v313, %v313
        %v330 = vmul.f32 %v314, %v314
        %v331 = vsel %vm186, %v315, 0.0
        %332 = vadd.xlane.f32.xlu0 %v331
        %v333 = vpop.xlane.xlu0 %332
        %v334 = vsel %vm186, %v316, 0.0
        %335 = vadd.xlane.f32.xlu0 %v334
        %v336 = vpop.xlane.xlu0 %335
        %v337 = vsel %vm186, %v317, 0.0
        %338 = vadd.xlane.f32.xlu0 %v337
        %v339 = vpop.xlane.xlu0 %338
        %v340 = vsel %vm186, %v318, 0.0
        %341 = vadd.xlane.f32.xlu0 %v340
        %v342 = vpop.xlane.xlu0 %341
        %v343 = vsel %vm186, %v319, 0.0
        %344 = vadd.xlane.f32.xlu0 %v343
        %v345 = vpop.xlane.xlu0 %344
        %v346 = vsel %vm186, %v320, 0.0
        %347 = vadd.xlane.f32.xlu0 %v346
        %v348 = vpop.xlane.xlu0 %347
        %v349 = vsel %vm186, %v321, 0.0
        %350 = vadd.xlane.f32.xlu0 %v349
        %v351 = vpop.xlane.xlu0 %350
        %v352 = vsel %vm186, %v322, 0.0
        %353 = vadd.xlane.f32.xlu0 %v352
        %v354 = vpop.xlane.xlu0 %353
        %v355 = vsel %vm186, %v323, 0.0
        %356 = vadd.xlane.f32.xlu0 %v355
        %v357 = vpop.xlane.xlu0 %356
        %v358 = vsel %vm186, %v324, 0.0
        %359 = vadd.xlane.f32.xlu0 %v358
        %v360 = vpop.xlane.xlu0 %359
        %v361 = vsel %vm186, %v325, 0.0
        %362 = vadd.xlane.f32.xlu0 %v361
        %v363 = vpop.xlane.xlu0 %362
        %v364 = vsel %vm186, %v326, 0.0
        %365 = vadd.xlane.f32.xlu0 %v364
        %v366 = vpop.xlane.xlu0 %365
        %v367 = vsel %vm186, %v327, 0.0
        %368 = vadd.xlane.f32.xlu0 %v367
        %v369 = vpop.xlane.xlu0 %368
        %v370 = vsel %vm186, %v328, 0.0
        %371 = vadd.xlane.f32.xlu0 %v370
        %v372 = vpop.xlane.xlu0 %371
        %v373 = vsel %vm186, %v329, 0.0
        %374 = vadd.xlane.f32.xlu0 %v373
        %v375 = vpop.xlane.xlu0 %374
        %v376 = vsel %vm186, %v330, 0.0
        %377 = vadd.xlane.f32.xlu0 %v376
        %v378 = vpop.xlane.xlu0 %377
        %v379 = vadd.f32 %v333, %v336
        %v380 = vrot.slane %v379, 4
        %v381 = vadd.f32 %v379, %v380
        %v382 = vrot.slane %v381, 2
        %v383 = vadd.f32 %v381, %v382
        %v384 = vrot.slane %v383, 1
        %v385 = vadd.f32 %v383, %v384
        %v386 = vadd.f32 %v339, %v342
        %v387 = vrot.slane %v386, 4
        %v388 = vadd.f32 %v386, %v387
        %v389 = vrot.slane %v388, 2
        %v390 = vadd.f32 %v388, %v389
        %v391 = vrot.slane %v390, 1
        %v392 = vadd.f32 %v390, %v391
        %v393 = vadd.f32 %v345, %v348
        %v394 = vrot.slane %v393, 4
        %v395 = vadd.f32 %v393, %v394
        %v396 = vrot.slane %v395, 2
        %v397 = vadd.f32 %v395, %v396
        %v398 = vrot.slane %v397, 1
        %v399 = vadd.f32 %v397, %v398
        %v400 = vadd.f32 %v351, %v354
        %v401 = vrot.slane %v400, 4
        %v402 = vadd.f32 %v400, %v401
        %v403 = vrot.slane %v402, 2
        %v404 = vadd.f32 %v402, %v403
        %v405 = vrot.slane %v404, 1
        %v406 = vadd.f32 %v404, %v405
        %v407 = vadd.f32 %v357, %v360
        %v408 = vrot.slane %v407, 4
        %v409 = vadd.f32 %v407, %v408
        %v410 = vrot.slane %v409, 2
        %v411 = vadd.f32 %v409, %v410
        %v412 = vrot.slane %v411, 1
        %v413 = vadd.f32 %v411, %v412
        %v414 = vadd.f32 %v363, %v366
        %v415 = vrot.slane %v414, 4
        %v416 = vadd.f32 %v414, %v415
        %v417 = vrot.slane %v416, 2
        %v418 = vadd.f32 %v416, %v417
        %v419 = vrot.slane %v418, 1
        %v420 = vadd.f32 %v418, %v419
        %v421 = vadd.f32 %v369, %v372
        %v422 = vrot.slane %v421, 4
        %v423 = vadd.f32 %v421, %v422
        %v424 = vrot.slane %v423, 2
        %v425 = vadd.f32 %v423, %v424
        %v426 = vrot.slane %v425, 1
        %v427 = vadd.f32 %v425, %v426
        %v428 = vadd.f32 %v375, %v378
        %v429 = vrot.slane %v428, 4
        %v430 = vadd.f32 %v428, %v429
        %v431 = vrot.slane %v430, 2
        %v432 = vadd.f32 %v430, %v431
        %v433 = vrot.slane %v432, 1
        %v434 = vadd.f32 %v432, %v433
        %v435 = vmul.f32 %v178, %v291
        %v436 = vmul.f32 %v179, %v292
        %v437 = vmul.f32 %v180, %v293
        %v438 = vmul.f32 %v181, %v294
        %v439 = vmul.f32 %v182, %v295
        %v440 = vmul.f32 %v183, %v296
        %v441 = vmul.f32 %v184, %v297
        %v442 = vmul.f32 %v185, %v298
        %451 = vrot.lane.b32.xlu0 %v178, 127
        %v452 = vpop.permute.xlu0 %451
        %453 = vrot.lane.b32.xlu0 %v179, 127
        %v454 = vpop.permute.xlu0 %453
        %455 = vrot.lane.b32.xlu0 %v180, 127
        %v456 = vpop.permute.xlu0 %455
        %457 = vrot.lane.b32.xlu0 %v181, 127
        %v458 = vpop.permute.xlu0 %457
        %459 = vrot.lane.b32.xlu0 %v182, 127
        %v460 = vpop.permute.xlu0 %459
        %461 = vrot.lane.b32.xlu0 %v183, 127
        %v462 = vpop.permute.xlu0 %461
        %463 = vrot.lane.b32.xlu0 %v184, 127
        %v464 = vpop.permute.xlu0 %463
        %465 = vrot.lane.b32.xlu0 %v185, 127
        %v466 = vpop.permute.xlu0 %465
        %v475 = vadd.f32 %v435, %v452
        %v476 = vadd.f32 %v436, %v454
        %v477 = vadd.f32 %v437, %v456
        %v478 = vadd.f32 %v438, %v458
        %v479 = vadd.f32 %v439, %v460
        %v480 = vadd.f32 %v440, %v462
        %v481 = vadd.f32 %v441, %v464
        %v482 = vadd.f32 %v442, %v466
        %vm483 = vcmask 0
        %v484 = vsel %vm483, %v475, 0.0
        %v485 = vsel %vm483, %v476, 0.0
        %v486 = vadd.f32 %v484, %v485
        %v487 = vrcp.pop 2.0
        %v488 = vmul.f32 %v486, %v487
        %v489 = vsel %vm483, %v477, 0.0
        %v490 = vsel %vm483, %v478, 0.0
        %v491 = vadd.f32 %v489, %v490
        %v492 = vmul.f32 %v491, %v487
        %v493 = vsel %vm483, %v479, 0.0
        %v494 = vsel %vm483, %v480, 0.0
        %v495 = vadd.f32 %v493, %v494
        %v496 = vmul.f32 %v495, %v487
        %v497 = vsel %vm483, %v481, 0.0
        %v498 = vsel %vm483, %v482, 0.0
        %v499 = vadd.f32 %v497, %v498
        %v500 = vmul.f32 %v499, %v487
        %v501 = vmul.f32 %v178, %v178
        %v502 = vmul.f32 %v179, %v179
        %v503 = vmul.f32 %v180, %v180
        %v504 = vmul.f32 %v181, %v181
        %v505 = vmul.f32 %v182, %v182
        %v506 = vmul.f32 %v183, %v183
        %v507 = vmul.f32 %v184, %v184
        %v508 = vmul.f32 %v185, %v185
        %v509 = vmul.f32 %v501, %v385
        %v510 = vmul.f32 %v502, %v392
        %v511 = vmul.f32 %v503, %v399
        %v512 = vmul.f32 %v504, %v406
        %v513 = vmul.f32 %v505, %v413
        %v514 = vmul.f32 %v506, %v420
        %v515 = vmul.f32 %v507, %v427
        %v516 = vmul.f32 %v508, %v434
        %v517 = vsub.f32 %v475, %v488
        %v518 = vsub.f32 %v476, %v488
        %v519 = vsub.f32 %v477, %v492
        %v520 = vsub.f32 %v478, %v492
        %v521 = vsub.f32 %v479, %v496
        %v522 = vsub.f32 %v480, %v496
        %v523 = vsub.f32 %v481, %v500
        %v524 = vsub.f32 %v482, %v500
        %v525 = vmul.f32 %v517, %v517
        %v526 = vmul.f32 %v518, %v518
        %v527 = vmul.f32 %v519, %v519
        %v528 = vmul.f32 %v520, %v520
        %v529 = vmul.f32 %v521, %v521
        %v530 = vmul.f32 %v522, %v522
        %v531 = vmul.f32 %v523, %v523
        %v532 = vmul.f32 %v524, %v524
        %v533 = vmul.f32 %v525, 256.0
        %v534 = vmul.f32 %v526, 256.0
        %v535 = vmul.f32 %v527, 256.0
        %v536 = vmul.f32 %v528, 256.0
        %v537 = vmul.f32 %v529, 256.0
        %v538 = vmul.f32 %v530, 256.0
        %v539 = vmul.f32 %v531, 256.0
        %v540 = vmul.f32 %v532, 256.0
        %v541 = vadd.f32 %v509, %v533
        %v542 = vadd.f32 %v510, %v534
        %v543 = vadd.f32 %v511, %v535
        %v544 = vadd.f32 %v512, %v536
        %v545 = vadd.f32 %v513, %v537
        %v546 = vadd.f32 %v514, %v538
        %v547 = vadd.f32 %v515, %v539
        %v548 = vadd.f32 %v516, %v540
        %v549 = vsel %vm483, %v541, 0.0
        %v550 = vsel %vm483, %v542, 0.0
        %v551 = vadd.f32 %v549, %v550
        %v552 = vmul.f32 %v551, 0.001953125
        %v553 = vadd.f32 %v552, 1e-05
        %v554 = vrsqrt.pop %v553
        %v555 = vsel %vm483, %v543, 0.0
        %v556 = vsel %vm483, %v544, 0.0
        %v557 = vadd.f32 %v555, %v556
        %v558 = vmul.f32 %v557, 0.001953125
        %v559 = vadd.f32 %v558, 1e-05
        %v560 = vrsqrt.pop %v559
        %v561 = vsel %vm483, %v545, 0.0
        %v562 = vsel %vm483, %v546, 0.0
        %v563 = vadd.f32 %v561, %v562
        %v564 = vmul.f32 %v563, 0.001953125
        %v565 = vadd.f32 %v564, 1e-05
        %v566 = vrsqrt.pop %v565
        %v567 = vsel %vm483, %v547, 0.0
        %v568 = vsel %vm483, %v548, 0.0
        %v569 = vadd.f32 %v567, %v568
        %v570 = vmul.f32 %v569, 0.001953125
        %v571 = vadd.f32 %v570, 1e-05
        %v572 = vrsqrt.pop %v571
        %573 = vrot.lane.b32.xlu0 %v178, 2
        %v574 = vpop.permute.xlu0 %573
        %575 = vrot.lane.b32.xlu0 %v179, 2
        %v576 = vpop.permute.xlu0 %575
        %577 = vrot.lane.b32.xlu0 %v180, 2
        %v578 = vpop.permute.xlu0 %577
        %579 = vrot.lane.b32.xlu0 %v181, 2
        %v580 = vpop.permute.xlu0 %579
        %581 = vrot.lane.b32.xlu0 %v182, 2
        %v582 = vpop.permute.xlu0 %581
        %583 = vrot.lane.b32.xlu0 %v183, 2
        %v584 = vpop.permute.xlu0 %583
        %585 = vrot.lane.b32.xlu0 %v184, 2
        %v586 = vpop.permute.xlu0 %585
        %587 = vrot.lane.b32.xlu0 %v185, 2
        %v588 = vpop.permute.xlu0 %587
        %v597 = vmul.f32 %v178, %v574
        %v598 = vmul.f32 %v179, %v576
        %v599 = vmul.f32 %v180, %v578
        %v600 = vmul.f32 %v181, %v580
        %v601 = vmul.f32 %v182, %v582
        %v602 = vmul.f32 %v183, %v584
        %v603 = vmul.f32 %v184, %v586
        %v604 = vmul.f32 %v185, %v588
        %v610 = vunpack.c.l.s4 1966171168
        %v611 = vunpack.c.0.s8 %v610
        %v612 = vlaneseq
        %v613 = vshrl.u32 %v612, 7
        %v614 = vsub.s32 %v611, %v613
        %v615 = vrot.slane %v554, %v614
        %v617 = vunpack.c.l.s4 1966171168
        %v618 = vunpack.c.0.s8 %v617
        %v619 = vlaneseq
        %v620 = vshrl.u32 %v619, 7
        %v621 = vsub.s32 %v618, %v620
        %v622 = vrot.slane %v615, %v621
        %v624 = vunpack.c.l.s4 1966171168
        %v625 = vunpack.c.0.s8 %v624
        %v626 = vlaneseq
        %v627 = vshrl.u32 %v626, 7
        %v628 = vsub.s32 %v625, %v627
        %v629 = vrot.slane %v560, %v628
        %v631 = vunpack.c.l.s4 1966171168
        %v632 = vunpack.c.0.s8 %v631
        %v633 = vlaneseq
        %v634 = vshrl.u32 %v633, 7
        %v635 = vsub.s32 %v632, %v634
        %v636 = vrot.slane %v629, %v635
        %v638 = vunpack.c.l.s4 1966171168
        %v639 = vunpack.c.0.s8 %v638
        %v640 = vlaneseq
        %v641 = vshrl.u32 %v640, 7
        %v642 = vsub.s32 %v639, %v641
        %v643 = vrot.slane %v566, %v642
        %v645 = vunpack.c.l.s4 1966171168
        %v646 = vunpack.c.0.s8 %v645
        %v647 = vlaneseq
        %v648 = vshrl.u32 %v647, 7
        %v649 = vsub.s32 %v646, %v648
        %v650 = vrot.slane %v643, %v649
        %v652 = vunpack.c.l.s4 1966171168
        %v653 = vunpack.c.0.s8 %v652
        %v654 = vlaneseq
        %v655 = vshrl.u32 %v654, 7
        %v656 = vsub.s32 %v653, %v655
        %v657 = vrot.slane %v572, %v656
        %v659 = vunpack.c.l.s4 1966171168
        %v660 = vunpack.c.0.s8 %v659
        %v661 = vlaneseq
        %v662 = vshrl.u32 %v661, 7
        %v663 = vsub.s32 %v660, %v662
        %v664 = vrot.slane %v657, %v663
        %665 = vrot.lane.b32.xlu0 %v622, 2
        %v666 = vpop.permute.xlu0 %665
        %667 = vrot.lane.b32.xlu0 %v636, 2
        %v668 = vpop.permute.xlu0 %667
        %669 = vrot.lane.b32.xlu0 %v650, 2
        %v670 = vpop.permute.xlu0 %669
        %671 = vrot.lane.b32.xlu0 %v664, 2
        %v672 = vpop.permute.xlu0 %671
        %v677 = vmul.f32 %v597, %v666
        %v678 = vmul.f32 %v598, %v666
        %v679 = vmul.f32 %v599, %v668
        %v680 = vmul.f32 %v600, %v668
        %v681 = vmul.f32 %v601, %v670
        %v682 = vmul.f32 %v602, %v670
        %v683 = vmul.f32 %v603, %v672
        %v684 = vmul.f32 %v604, %v672
        %v685 = vmul.f32 %v178, %v666
        %v686 = vmul.f32 %v179, %v666
        %v687 = vmul.f32 %v180, %v668
        %v688 = vmul.f32 %v181, %v668
        %v689 = vmul.f32 %v182, %v670
        %v690 = vmul.f32 %v183, %v670
        %v691 = vmul.f32 %v184, %v672
        %v692 = vmul.f32 %v185, %v672
        %v698 = vunpack.c.l.s4 1966171168
        %v699 = vunpack.c.0.s8 %v698
        %v700 = vlaneseq
        %v701 = vshrl.u32 %v700, 7
        %v702 = vsub.s32 %v699, %v701
        %v703 = vrot.slane %v488, %v702
        %v705 = vunpack.c.l.s4 1966171168
        %v706 = vunpack.c.0.s8 %v705
        %v707 = vlaneseq
        %v708 = vshrl.u32 %v707, 7
        %v709 = vsub.s32 %v706, %v708
        %v710 = vrot.slane %v703, %v709
        %v712 = vunpack.c.l.s4 1966171168
        %v713 = vunpack.c.0.s8 %v712
        %v714 = vlaneseq
        %v715 = vshrl.u32 %v714, 7
        %v716 = vsub.s32 %v713, %v715
        %v717 = vrot.slane %v492, %v716
        %v719 = vunpack.c.l.s4 1966171168
        %v720 = vunpack.c.0.s8 %v719
        %v721 = vlaneseq
        %v722 = vshrl.u32 %v721, 7
        %v723 = vsub.s32 %v720, %v722
        %v724 = vrot.slane %v717, %v723
        %v726 = vunpack.c.l.s4 1966171168
        %v727 = vunpack.c.0.s8 %v726
        %v728 = vlaneseq
        %v729 = vshrl.u32 %v728, 7
        %v730 = vsub.s32 %v727, %v729
        %v731 = vrot.slane %v496, %v730
        %v733 = vunpack.c.l.s4 1966171168
        %v734 = vunpack.c.0.s8 %v733
        %v735 = vlaneseq
        %v736 = vshrl.u32 %v735, 7
        %v737 = vsub.s32 %v734, %v736
        %v738 = vrot.slane %v731, %v737
        %v740 = vunpack.c.l.s4 1966171168
        %v741 = vunpack.c.0.s8 %v740
        %v742 = vlaneseq
        %v743 = vshrl.u32 %v742, 7
        %v744 = vsub.s32 %v741, %v743
        %v745 = vrot.slane %v500, %v744
        %v747 = vunpack.c.l.s4 1966171168
        %v748 = vunpack.c.0.s8 %v747
        %v749 = vlaneseq
        %v750 = vshrl.u32 %v749, 7
        %v751 = vsub.s32 %v748, %v750
        %v752 = vrot.slane %v745, %v751
        %753 = vrot.lane.b32.xlu0 %v710, 1
        %v754 = vpop.permute.xlu0 %753
        %755 = vrot.lane.b32.xlu0 %v724, 1
        %v756 = vpop.permute.xlu0 %755
        %757 = vrot.lane.b32.xlu0 %v738, 1
        %v758 = vpop.permute.xlu0 %757
        %759 = vrot.lane.b32.xlu0 %v752, 1
        %v760 = vpop.permute.xlu0 %759
        %v765 = vsub.f32 %v178, %v754
        %v766 = vsub.f32 %v179, %v754
        %v767 = vsub.f32 %v180, %v756
        %v768 = vsub.f32 %v181, %v756
        %v769 = vsub.f32 %v182, %v758
        %v770 = vsub.f32 %v183, %v758
        %v771 = vsub.f32 %v184, %v760
        %v772 = vsub.f32 %v185, %v760
        %781 = vrot.lane.b32.xlu0 %v765, 1
        %v782 = vpop.permute.xlu0 %781
        %783 = vrot.lane.b32.xlu0 %v766, 1
        %v784 = vpop.permute.xlu0 %783
        %785 = vrot.lane.b32.xlu0 %v767, 1
        %v786 = vpop.permute.xlu0 %785
        %787 = vrot.lane.b32.xlu0 %v768, 1
        %v788 = vpop.permute.xlu0 %787
        %789 = vrot.lane.b32.xlu0 %v769, 1
        %v790 = vpop.permute.xlu0 %789
        %791 = vrot.lane.b32.xlu0 %v770, 1
        %v792 = vpop.permute.xlu0 %791
        %793 = vrot.lane.b32.xlu0 %v771, 1
        %v794 = vpop.permute.xlu0 %793
        %795 = vrot.lane.b32.xlu0 %v772, 1
        %v796 = vpop.permute.xlu0 %795
        %v805 = vmul.f32 %v685, %v782
        %v806 = vmul.f32 %v686, %v784
        %v807 = vmul.f32 %v687, %v786
        %v808 = vmul.f32 %v688, %v788
        %v809 = vmul.f32 %v689, %v790
        %v810 = vmul.f32 %v690, %v792
        %v811 = vmul.f32 %v691, %v794
        %v812 = vmul.f32 %v692, %v796
        %v813 = vadd.f32 %v805, %v452
        %v814 = vadd.f32 %v806, %v454
        %v815 = vadd.f32 %v807, %v456
        %v816 = vadd.f32 %v808, %v458
        %v817 = vadd.f32 %v809, %v460
        %v818 = vadd.f32 %v810, %v462
        %v819 = vadd.f32 %v811, %v464
        %v820 = vadd.f32 %v812, %v466
        %vm821 = vcmask 16400
        %v822 = vsel %vm821, %v813, 0.0
        %v823 = vsel %vm821, %v814, 0.0
        %v824 = vadd.f32 %v822, %v823
        %v825 = vsel %vm821, %v815, 0.0
        %v826 = vadd.f32 %v824, %v825
        %v827 = vsel %vm821, %v816, 0.0
        %v828 = vadd.f32 %v826, %v827
        %v829 = vsel %vm821, %v817, 0.0
        %v830 = vadd.f32 %v828, %v829
        %v831 = vsel %vm821, %v818, 0.0
        %v832 = vadd.f32 %v830, %v831
        %v833 = vsel %vm821, %v819, 0.0
        %v834 = vadd.f32 %v832, %v833
        %v835 = vsel %vm821, %v820, 0.0
        %v836 = vadd.f32 %v834, %v835
        %v845 = vlaneseq
        %v846 = vshrl.u32 %v845, 7
        %v847 = vsub.s32 0, %v846
        %v848 = vrot.slane %v677, %v847
        %v849 = vlaneseq
        %v850 = vshrl.u32 %v849, 7
        %v851 = vsub.s32 0, %v850
        %v852 = vrot.slane %v678, %v851
        %v853 = vlaneseq
        %v854 = vshrl.u32 %v853, 7
        %v855 = vsub.s32 0, %v854
        %v856 = vrot.slane %v679, %v855
        %v857 = vlaneseq
        %v858 = vshrl.u32 %v857, 7
        %v859 = vsub.s32 0, %v858
        %v860 = vrot.slane %v680, %v859
        %v861 = vlaneseq
        %v862 = vshrl.u32 %v861, 7
        %v863 = vsub.s32 0, %v862
        %v864 = vrot.slane %v681, %v863
        %v865 = vlaneseq
        %v866 = vshrl.u32 %v865, 7
        %v867 = vsub.s32 0, %v866
        %v868 = vrot.slane %v682, %v867
        %v869 = vlaneseq
        %v870 = vshrl.u32 %v869, 7
        %v871 = vsub.s32 0, %v870
        %v872 = vrot.slane %v683, %v871
        %v873 = vlaneseq
        %v874 = vshrl.u32 %v873, 7
        %v875 = vsub.s32 0, %v874
        %v876 = vrot.slane %v684, %v875
        %877 = vset.pattern.permute.xlu0 2
        %878 = vperm.xlu0 %877, %v848
        %v879 = vpop.permute.xlu0 %878
        %881 = vset.pattern.permute.xlu0 2
        %882 = vperm.xlu0 %881, %v852
        %v883 = vpop.permute.xlu0 %882
        %885 = vset.pattern.permute.xlu0 2
        %886 = vperm.xlu0 %885, %v856
        %v887 = vpop.permute.xlu0 %886
        %889 = vset.pattern.permute.xlu0 2
        %890 = vperm.xlu0 %889, %v860
        %v891 = vpop.permute.xlu0 %890
        %893 = vset.pattern.permute.xlu0 2
        %894 = vperm.xlu0 %893, %v864
        %v895 = vpop.permute.xlu0 %894
        %897 = vset.pattern.permute.xlu0 2
        %898 = vperm.xlu0 %897, %v868
        %v899 = vpop.permute.xlu0 %898
        %901 = vset.pattern.permute.xlu0 2
        %902 = vperm.xlu0 %901, %v872
        %v903 = vpop.permute.xlu0 %902
        %905 = vset.pattern.permute.xlu0 2
        %906 = vperm.xlu0 %905, %v876
        %v907 = vpop.permute.xlu0 %906
        %v909 = vmul.f32 %v879, %v162
        %v910 = vmul.f32 %v879, %v163
        %v911 = vmul.f32 %v883, %v164
        %v912 = vmul.f32 %v883, %v165
        %v913 = vmul.f32 %v887, %v166
        %v914 = vmul.f32 %v887, %v167
        %v915 = vmul.f32 %v891, %v168
        %v916 = vmul.f32 %v891, %v169
        %v917 = vmul.f32 %v895, %v170
        %v918 = vmul.f32 %v895, %v171
        %v919 = vmul.f32 %v899, %v172
        %v920 = vmul.f32 %v899, %v173
        %v921 = vmul.f32 %v903, %v174
        %v922 = vmul.f32 %v903, %v175
        %v923 = vmul.f32 %v907, %v176
        %v924 = vmul.f32 %v907, %v177
        %v925 = vsel %vm186, %v909, 0.0
        %v926 = vsel %vm186, %v911, 0.0
        %v927 = vadd.f32 %v925, %v926
        %v928 = vsel %vm186, %v913, 0.0
        %v929 = vadd.f32 %v927, %v928
        %v930 = vsel %vm186, %v915, 0.0
        %v931 = vadd.f32 %v929, %v930
        %v932 = vsel %vm186, %v917, 0.0
        %v933 = vadd.f32 %v931, %v932
        %v934 = vsel %vm186, %v919, 0.0
        %v935 = vadd.f32 %v933, %v934
        %v936 = vsel %vm186, %v921, 0.0
        %v937 = vadd.f32 %v935, %v936
        %v938 = vsel %vm186, %v923, 0.0
        %v939 = vadd.f32 %v937, %v938
        %v940 = vsel %vm186, %v910, 0.0
        %v941 = vsel %vm186, %v912, 0.0
        %v942 = vadd.f32 %v940, %v941
        %v943 = vsel %vm186, %v914, 0.0
        %v944 = vadd.f32 %v942, %v943
        %v945 = vsel %vm186, %v916, 0.0
        %v946 = vadd.f32 %v944, %v945
        %v947 = vsel %vm186, %v918, 0.0
        %v948 = vadd.f32 %v946, %v947
        %v949 = vsel %vm186, %v920, 0.0
        %v950 = vadd.f32 %v948, %v949
        %v951 = vsel %vm186, %v922, 0.0
        %v952 = vadd.f32 %v950, %v951
        %v953 = vsel %vm186, %v924, 0.0
        %v954 = vadd.f32 %v952, %v953
        %956 = vrot.lane.b32.xlu0 %v836, 126
        %v957 = vpop.permute.xlu0 %956
        %s958 = vtos %v957
        %v959 = vstv %s958
        %v961 = vadd.f32 %v939, %v959
        %v962 = vadd.f32 %v954, %v959
        %v963 = vxor.u32 %v961, 2147483648
        %v964 = vxor.u32 %v962, 2147483648
        %v965 = vmul.f32 %v963, 1.442695
        %v966 = vpow.pop %v965
        %v967 = vmul.f32 %v964, 1.442695
        %v968 = vpow.pop %v967
        %v969 = vadd.f32 %v966, 1.0
        %v970 = vadd.f32 %v968, 1.0
        %v971 = vrcp.pop %v969
        %v972 = vmul.f32 1.0, %v971
        %v973 = vrcp.pop %v970
        %v974 = vmul.f32 1.0, %v973
        %v975 = vmul.f32 %v162, %v972
        %v976 = vmul.f32 %v163, %v974
        %v977 = vmul.f32 %v164, %v972
        %v978 = vmul.f32 %v165, %v974
        %v979 = vmul.f32 %v166, %v972
        %v980 = vmul.f32 %v167, %v974
        %v981 = vmul.f32 %v168, %v972
        %v982 = vmul.f32 %v169, %v974
        %v983 = vmul.f32 %v170, %v972
        %v984 = vmul.f32 %v171, %v974
        %v985 = vmul.f32 %v172, %v972
        %v986 = vmul.f32 %v173, %v974
        %v987 = vmul.f32 %v174, %v972
        %v988 = vmul.f32 %v175, %v974
        %v989 = vmul.f32 %v176, %v972
        %v990 = vmul.f32 %v177, %v974
        %991 = vst.msk [vmem:[%s161] sm:$0xff] %vm186, %v975
        %992 = vst.msk [vmem:[%s161 + $0x8] sm:$0xff] %vm186, %v976
        %993 = vst.msk [vmem:[%s161 + $0x10] sm:$0xff] %vm186, %v977
        %994 = vst.msk [vmem:[%s161 + $0x18] sm:$0xff] %vm186, %v978
        %995 = vst.msk [vmem:[%s161 + $0x20] sm:$0xff] %vm186, %v979
        %996 = vst.msk [vmem:[%s161 + $0x28] sm:$0xff] %vm186, %v980
        %997 = vst.msk [vmem:[%s161 + $0x30] sm:$0xff] %vm186, %v981
        %998 = vst.msk [vmem:[%s161 + $0x38] sm:$0xff] %vm186, %v982
        %999 = vst.msk [vmem:[%s161 + $0x40] sm:$0xff] %vm186, %v983
        %1000 = vst.msk [vmem:[%s161 + $0x48] sm:$0xff] %vm186, %v984
        %1001 = vst.msk [vmem:[%s161 + $0x50] sm:$0xff] %vm186, %v985
        %1002 = vst.msk [vmem:[%s161 + $0x58] sm:$0xff] %vm186, %v986
        %1003 = vst.msk [vmem:[%s161 + $0x60] sm:$0xff] %vm186, %v987
        %1004 = vst.msk [vmem:[%s161 + $0x68] sm:$0xff] %vm186, %v988
        %1005 = vst.msk [vmem:[%s161 + $0x70] sm:$0xff] %vm186, %v989
        %1006 = vst.msk [vmem:[%s161 + $0x78] sm:$0xff] %vm186, %v990
        %s1007 = sand.u32 %s74, 1
        %s1008 = scalar_lea.sflag [#allocation4], %s1007
        %s1009 = sand.u32 %s74, 1
        %s1010 = smul.addr %s1009, 128
        %s1011 = scalar_lea.vmem [#allocation5], %s1010
        // Predicated region
        $region33: #{sse_pallas.1} parent=27 // pred_check
          %p1012 = pneg %p84
        $region34: #{sse_pallas.1} parent=27 // pred_check_branch
          %1014 = sbr.rel (%p1012) target = $region36
        $region35: #{sse_pallas.1} parent=27 // pred_region
          %s1016 = ssub.s32 2048, 2048
          %1017 = vsyncadd %s1008, %s1016
          %s1018 = smul.addr %s19, 16
          %s1019 = smul.addr %s1018, 128
          %s1020 = scalar_lea.hbm %s2, %s1019
          %s1021 = sshll.u32 %s1011, 4
          %s1022 = int_to_ptr.vmem [resolvable:$true] %s1021
          %1027 = dma.vmem_to_hbm [thread:$0]  %s1022, 2048, %s1020, %s1008, 128, 128, 8
        $region36: #{sse_pallas.1} parent=27 // pred_fallthru
          _
      $region28: #{sse_pallas.1} parent=5 // pred_fallthru
        _
      %p1028 = scmp.le.s32.totalorder 2, %s14
      // Predicated region
      $region37: #{sse_pallas.1} parent=5 // pred_check
        %p1029 = pneg %p1028
      $region38: #{sse_pallas.1} parent=5 // pred_check_branch
        %1031 = sbr.rel (%p1029) target = $region40
      $region39: #{sse_pallas.1} parent=5 // pred_region
        %s1032 = ssub.s32 %s14, 2
        // Predicated region
        $region41: #{sse_pallas.1} parent=39 // pred_check
          %p1033 = pneg %p90
        $region42: #{sse_pallas.1} parent=39 // pred_check_branch
          %1035 = sbr.rel (%p1033) target = $region44
        $region43: #{sse_pallas.1} parent=39 // pred_region
          %s1036 = sand.u32 %s75, 1
          %s1037 = scalar_lea.sflag [#allocation4], %s1036
          %s1038 = sand.u32 %s75, 1
          %s1039 = smul.addr %s1038, 128
          %s1040 = scalar_lea.vmem [#allocation5], %s1039
          %1041 = dma.done %s1037, 2048
        $region44: #{sse_pallas.1} parent=39 // pred_fallthru
          _
      $region40: #{sse_pallas.1} parent=5 // pred_fallthru
        _
    $region6: #{sse_pallas.1} parent=1 // loop_footer
      %s18 = sadd.s32 1, %s14
    $region7: #{sse_pallas.1} parent=1 // loop_footer_branch
      %13 = sbr.rel target = $region3
    $region8: #{sse_pallas.1} parent=1 // loop_exit
      _
    %1042 = vsyncpa [#allocation3], 1
    %s1043 = scalar_lea.sflag [#allocation3], 1
    %1044 = vsyncpa %s1043, 1
    %1045 = vsyncpa [#allocation4], 1
    %s1046 = scalar_lea.sflag [#allocation4], 1
    %1047 = vsyncpa %s1046, 1

</llo_original>
